<compile_context>
chip_gen: v7x
topology: tpu7x:2x2x1
jax: 0.10.0
libtpu: 0.0.40
codegen_flags: <defaults>
</compile_context>

<pallas_src>
import functools

import jax
import jax.numpy as jnp
from jax import lax
from jax.experimental import pallas as pl
from jax.experimental.pallas import tpu as pltpu


def _spatial_attention_kernel(scale_ref, x_ref, wf_ref, wm_ref, o_ref,
                              t_scr, m_scr, *, q_tile):
    # scale_ref: (1,)        f32  SMEM
    # x_ref    : (1, C, HW)  f32  VMEM (resident across row tiles of a batch)
    # wf_ref   : (C, C)      bf16 VMEM  fused reduce weight  W1^T @ W2
    # wm_ref   : (C, C)      bf16 VMEM  value (conv) weight
    # o_ref    : (1, C, HW)  f32  VMEM  output accumulator (resident)
    # t_scr    : (C, HW)     bf16 scratch  t = (W1^T W2) @ x   ("key" side)
    # m_scr    : (C, HW)     bf16 scratch  m = Wm @ x          ("value" side)
    ti = pl.program_id(1)

    # Per-batch projections: computed once at the first row tile, reused after.
    @pl.when(ti == 0)
    def _init():
        x_bf = x_ref[0].astype(jnp.bfloat16)                       # (C, HW)
        t_scr[...] = jnp.dot(wf_ref[...], x_bf,
                             preferred_element_type=jnp.float32
                             ).astype(jnp.bfloat16)
        m_scr[...] = jnp.dot(wm_ref[...], x_bf,
                             preferred_element_type=jnp.float32
                             ).astype(jnp.bfloat16)
        o_ref[0] = x_ref[0]                                        # residual init

    i0 = ti * q_tile
    if q_tile % 128 == 0:
        i0 = pl.multiple_of(i0, 128)

    # Row tile of the score matrix: S[i, j] = sum_c x[c, i0 + i] * t[c, j].
    # Contract the channel axis of both operands (transposed-LHS form) so the
    # MXU consumes the (C, tq) query slice directly -- no materialized f32
    # transpose per tile, and never anything (HW, HW)-shaped.
    xq_bf = x_ref[0, :, pl.ds(i0, q_tile)].astype(jnp.bfloat16)    # (C, tq)
    s = lax.dot_general(xq_bf, t_scr[...],
                        dimension_numbers=(((0,), (0,)), ((), ())),
                        preferred_element_type=jnp.float32)        # (tq, HW)

    # Softmax over j (last dim), statistics in f32.
    s_max = jnp.max(s, axis=-1, keepdims=True)                     # (tq, 1)
    p = jnp.exp(s - s_max)                                         # (tq, HW)
    l = jnp.sum(p, axis=-1, keepdims=True)                         # (tq, 1)
    # Fold 1/l and the learned scale into a single row-broadcast multiply;
    # reciprocal runs on the (otherwise idle) EUP slot.
    p = p * (scale_ref[0] * pl.reciprocal(l, approx=True))         # (tq, HW)

    # out[c, j] += sum_i m[c, i0 + i] * P[i, j]  -- natural MXU form, bf16 in,
    # f32 accumulate into the lane-dense (C, HW) output block.
    m_q = m_scr[:, pl.ds(i0, q_tile)]                              # (C, tq) bf16
    contrib = jnp.dot(m_q, p.astype(jnp.bfloat16),
                      preferred_element_type=jnp.float32)          # (C, HW)
    o_ref[0] = o_ref[0] + contrib


def spatial_attention(x_nchw, w1, w2, wm, scale, *, q_tile=None):
    """SpatialAttention forward.

    x_nchw: (N, C, H, W) f32.  w1, w2: (OC, C) 1x1 reduce-conv weights.
    wm: (C, C) 1x1 conv weight.  scale: (1,) f32.  Returns (N, C, H, W) f32.
    """
    n, c, h, w = x_nchw.shape
    hw = h * w

    # Channels-first flattening is a pure reshape -> no HBM transpose.
    x_chw = x_nchw.reshape(n, c, hw).astype(jnp.float32)

    # Fuse the two rank-OC reduce projections:  S = x^T (W1^T W2) x.
    # TODO(synk): for C > 256 the two-stage (OC-rank) form would need fewer MXU
    # passes; the fused form stays correct so it is used unconditionally here.
    wf = (w1.T @ w2).astype(jnp.bfloat16)                          # (C, C)
    wm_b = wm.astype(jnp.bfloat16)                                 # (C, C)

    # Row-tile the (HW, HW) score matrix so only a (q_tile, HW) slab is live.
    if q_tile is None:
        q_tile = hw
        for cand in (1024, 512, 256, 128):
            if hw > cand and hw % cand == 0:
                q_tile = cand
                break
    assert hw % q_tile == 0, "q_tile must divide H*W"
    n_qt = hw // q_tile

    kernel = functools.partial(_spatial_attention_kernel, q_tile=q_tile)

    out = pl.pallas_call(
        kernel,
        out_shape=jax.ShapeDtypeStruct((n, c, hw), jnp.float32),
        grid_spec=pltpu.PrefetchScalarGridSpec(
            num_scalar_prefetch=0,
            grid=(n, n_qt),  # batch (parallel) x score-row tiles (reduction)
            in_specs=[
                pl.BlockSpec(memory_space=pltpu.MemorySpace.SMEM),      # scale
                pl.BlockSpec((1, c, hw), lambda b, t: (b, 0, 0)),       # x (resident per batch)
                pl.BlockSpec((c, c), lambda b, t: (0, 0)),              # fused reduce weight
                pl.BlockSpec((c, c), lambda b, t: (0, 0)),              # value weight
            ],
            out_specs=pl.BlockSpec((1, c, hw), lambda b, t: (b, 0, 0)),  # accumulator
            scratch_shapes=[
                pltpu.VMEM((c, hw), jnp.bfloat16),   # t = (W1^T W2) @ x
                pltpu.VMEM((c, hw), jnp.bfloat16),   # m = Wm @ x
            ],
        ),
        compiler_params=pltpu.CompilerParams(
            dimension_semantics=("parallel", "arbitrary"),
            vmem_limit_bytes=48 * 1024 * 1024,
        ),
    )(scale.astype(jnp.float32), x_chw, wf, wm_b)

    return out.reshape(n, c, h, w)


def _reference(x, w1, w2, wm, scale):
    """Pure-JAX f32 mirror of the PyTorch forward (for verification)."""
    n, c, h, w = x.shape
    hw = h * w
    conv = lambda weight: jnp.einsum("oc,nchw->nohw", weight, x)
    r1 = conv(w1).reshape(n, -1, hw).transpose(0, 2, 1)     # (n, hw, oc)
    r2 = conv(w2).reshape(n, -1, hw)                        # (n, oc, hw)
    a = jax.nn.softmax(jnp.matmul(r1, r2), axis=2)          # (n, hw, hw)
    m = conv(wm).reshape(n, c, hw)                          # (n, c, hw)
    out = jnp.matmul(m, a) * scale[0]                       # module: no attention transpose
    return x + out.reshape(n, c, h, w)


if __name__ == "__main__":
    key = jax.random.PRNGKey(0)
    k_x, k_w1, k_w2, k_wm = jax.random.split(key, 4)

    # batch=2, channels=32 (reduction=8 -> oc=4), spatial 16x16 -> HW=256
    # (q_tile auto-selects 128 -> 2 row tiles per batch, exercising accumulation).
    N, C, H, W = 2, 32, 16, 16
    reduction = 8
    OC = C // reduction

    x = jax.random.normal(k_x, (N, C, H, W), dtype=jnp.float32)
    w1 = jax.random.normal(k_w1, (OC, C), dtype=jnp.float32) * 0.1   # conv_reduce1 weight
    w2 = jax.random.normal(k_w2, (OC, C), dtype=jnp.float32) * 0.1   # conv_reduce2 weight
    wm = jax.random.normal(k_wm, (C, C), dtype=jnp.float32) * 0.1    # conv weight
    # PyTorch initializes scale = 0 (output would equal x); use a nonzero value
    # so the attention path is actually exercised.
    scale = jnp.array([0.5], dtype=jnp.float32)

    y = spatial_attention(x, w1, w2, wm, scale)
    jax.block_until_ready(y)

    y_ref = _reference(x, w1, w2, wm, scale)
    assert y.shape == (N, C, H, W)
    # Tolerance relaxed vs pure-f32 because matmul inputs are bf16 on the MXU
    # (softmax stats and accumulation stay f32).
    assert jnp.allclose(y, y_ref, atol=2e-2, rtol=2e-2), "mismatch vs reference"

    print("KERNEL_OK")
</pallas_src>

<mosaic_0001>
module attributes {stable_mosaic.version = 11 : i64} {
  func.func @_spatial_attention_kernel(%arg0: i32, %arg1: i32, %arg2: memref<1xf32, #tpu.memory_space<smem>>, %arg3: memref<1x32x256xf32, #tpu.memory_space<vmem>>, %arg4: memref<32x32xbf16, #tpu.memory_space<vmem>>, %arg5: memref<32x32xbf16, #tpu.memory_space<vmem>>, %arg6: memref<1x32x256xf32, #tpu.memory_space<vmem>>, %arg7: memref<32x256xbf16, #tpu.memory_space<vmem>>, %arg8: memref<32x256xbf16, #tpu.memory_space<vmem>>) attributes {dimension_semantics = [#tpu.dimension_semantics<parallel>, #tpu.dimension_semantics<arbitrary>], iteration_bounds = array<i64: 2, 2>, scalar_prefetch = 0 : i64, scratch_operands = 2 : i64, tpu.core_type = #tpu.core_type<tc>, window_params = [{transform_indices = @transform_0, window_bounds = array<i64: 1>}, {transform_indices = @transform_1, window_bounds = array<i64: 1, 32, 256>}, {pipeline_mode = #tpu.pipeline_mode<synchronous>, transform_indices = @transform_2, window_bounds = array<i64: 32, 32>}, {pipeline_mode = #tpu.pipeline_mode<synchronous>, transform_indices = @transform_3, window_bounds = array<i64: 32, 32>}, {transform_indices = @transform_4, window_bounds = array<i64: 1, 32, 256>}]} {
    %c0_i32 = arith.constant 0 : i32
    %0 = arith.cmpi eq, %arg1, %c0_i32 : i32
    %1 = arith.extui %0 : i1 to i32
    %c0_i32_0 = arith.constant 0 : i32
    %2 = arith.cmpi ne, %1, %c0_i32_0 : i32
    scf.if %2 {
      %c0_15 = arith.constant 0 : index
      %c0_16 = arith.constant 0 : index
      %c0_17 = arith.constant 0 : index
      %34 = vector.load %arg3[%c0_15, %c0_16, %c0_17] : memref<1x32x256xf32, #tpu.memory_space<vmem>>, vector<1x32x256xf32>
      %35 = vector.shape_cast %34 : vector<1x32x256xf32> to vector<32x256xf32>
      %36 = arith.truncf %35 : vector<32x256xf32> to vector<32x256xbf16>
      %c0_18 = arith.constant 0 : index
      %c0_19 = arith.constant 0 : index
      %37 = vector.load %arg4[%c0_18, %c0_19] : memref<32x32xbf16, #tpu.memory_space<vmem>>, vector<32x32xbf16>
      %cst_20 = arith.constant dense<0.000000e+00> : vector<32x256xf32>
      %38 = tpu.matmul %37, %36, %cst_20 {dimension_numbers = #tpu.dot_dimension_numbers<[1], [0], [0], [1], [0, 0, 1, 1], [], []>} : vector<32x32xbf16>, vector<32x256xbf16>, vector<32x256xf32> -> vector<32x256xf32>
      %39 = arith.truncf %38 : vector<32x256xf32> to vector<32x256xbf16>
      %c0_21 = arith.constant 0 : index
      %c0_22 = arith.constant 0 : index
      %40 = vector.load %arg7[%c0_21, %c0_22] : memref<32x256xbf16, #tpu.memory_space<vmem>>, vector<32x256xbf16>
      tpu.vector_store %arg7[%c0_21, %c0_22], %39 {strides = array<i32>} : memref<32x256xbf16, #tpu.memory_space<vmem>>, vector<32x256xbf16>,
      %c0_23 = arith.constant 0 : index
      %c0_24 = arith.constant 0 : index
      %41 = vector.load %arg5[%c0_23, %c0_24] : memref<32x32xbf16, #tpu.memory_space<vmem>>, vector<32x32xbf16>
      %cst_25 = arith.constant dense<0.000000e+00> : vector<32x256xf32>
      %42 = tpu.matmul %41, %36, %cst_25 {dimension_numbers = #tpu.dot_dimension_numbers<[1], [0], [0], [1], [0, 0, 1, 1], [], []>} : vector<32x32xbf16>, vector<32x256xbf16>, vector<32x256xf32> -> vector<32x256xf32>
      %43 = arith.truncf %42 : vector<32x256xf32> to vector<32x256xbf16>
      %c0_26 = arith.constant 0 : index
      %c0_27 = arith.constant 0 : index
      %44 = vector.load %arg8[%c0_26, %c0_27] : memref<32x256xbf16, #tpu.memory_space<vmem>>, vector<32x256xbf16>
      tpu.vector_store %arg8[%c0_26, %c0_27], %43 {strides = array<i32>} : memref<32x256xbf16, #tpu.memory_space<vmem>>, vector<32x256xbf16>,
      %c0_28 = arith.constant 0 : index
      %c0_29 = arith.constant 0 : index
      %c0_30 = arith.constant 0 : index
      %45 = vector.load %arg3[%c0_28, %c0_29, %c0_30] : memref<1x32x256xf32, #tpu.memory_space<vmem>>, vector<1x32x256xf32>
      %46 = vector.shape_cast %45 : vector<1x32x256xf32> to vector<32x256xf32>
      %c0_31 = arith.constant 0 : index
      %c0_32 = arith.constant 0 : index
      %c0_33 = arith.constant 0 : index
      %47 = vector.load %arg6[%c0_31, %c0_32, %c0_33] : memref<1x32x256xf32, #tpu.memory_space<vmem>>, vector<1x32x256xf32>
      %48 = vector.shape_cast %47 : vector<1x32x256xf32> to vector<32x256xf32>
      %49 = vector.shape_cast %46 : vector<32x256xf32> to vector<1x32x256xf32>
      tpu.vector_store %arg6[%c0_31, %c0_32, %c0_33], %49 {strides = array<i32>} : memref<1x32x256xf32, #tpu.memory_space<vmem>>, vector<1x32x256xf32>,
    } else {
    }
    %c128_i32 = arith.constant 128 : i32
    %3 = arith.muli %arg1, %c128_i32 : i32
    %4 = tpu.assume_multiple %3, 128 : i32
    %c0 = arith.constant 0 : index
    %c0_1 = arith.constant 0 : index
    %5 = arith.index_cast %4 : i32 to index
    %6 = vector.load %arg3[%c0, %c0_1, %5] : memref<1x32x256xf32, #tpu.memory_space<vmem>>, vector<1x32x128xf32>
    %7 = vector.shape_cast %6 : vector<1x32x128xf32> to vector<32x128xf32>
    %8 = arith.truncf %7 : vector<32x128xf32> to vector<32x128xbf16>
    %c0_2 = arith.constant 0 : index
    %c0_3 = arith.constant 0 : index
    %9 = vector.load %arg7[%c0_2, %c0_3] : memref<32x256xbf16, #tpu.memory_space<vmem>>, vector<32x256xbf16>
    %cst = arith.constant dense<0.000000e+00> : vector<128x256xf32>
    %10 = tpu.matmul %8, %9, %cst {dimension_numbers = #tpu.dot_dimension_numbers<[0], [0], [1], [1], [0, 1, 1, 1], [], []>} : vector<32x128xbf16>, vector<32x256xbf16>, vector<128x256xf32> -> vector<128x256xf32>
    %cst_4 = arith.constant dense<0xFF800000> : vector<128xf32>
    %11 = vector.multi_reduction <maximumf>, %10, %cst_4 [1] : vector<128x256xf32> to vector<128xf32>
    %12 = vector.shape_cast %11 : vector<128xf32> to vector<128x1xf32>
    %13 = vector.broadcast %12 : vector<128x1xf32> to vector<128x256xf32>
    %14 = arith.subf %10, %13 : vector<128x256xf32>
    %15 = math.exp %14 : vector<128x256xf32>
    %cst_5 = arith.constant dense<0.000000e+00> : vector<128xf32>
    %16 = vector.multi_reduction <add>, %15, %cst_5 [1] : vector<128x256xf32> to vector<128xf32>
    %17 = vector.shape_cast %16 : vector<128xf32> to vector<128x1xf32>
    %c0_6 = arith.constant 0 : index
    %18 = memref.load %arg2[%c0_6] : memref<1xf32, #tpu.memory_space<smem>>
    %19 = tpu.reciprocal %17 {approx = true} : vector<128x1xf32> -> vector<128x1xf32>
    %20 = vector.broadcast %18 : f32 to vector<128x1xf32>
    %21 = arith.mulf %20, %19 : vector<128x1xf32>
    %22 = vector.broadcast %21 : vector<128x1xf32> to vector<128x256xf32>
    %23 = arith.mulf %15, %22 : vector<128x256xf32>
    %c0_7 = arith.constant 0 : index
    %24 = arith.index_cast %4 : i32 to index
    %25 = vector.load %arg8[%c0_7, %24] : memref<32x256xbf16, #tpu.memory_space<vmem>>, vector<32x128xbf16>
    %26 = arith.truncf %23 : vector<128x256xf32> to vector<128x256xbf16>
    %cst_8 = arith.constant dense<0.000000e+00> : vector<32x256xf32>
    %27 = tpu.matmul %25, %26, %cst_8 {dimension_numbers = #tpu.dot_dimension_numbers<[1], [0], [0], [1], [0, 0, 1, 1], [], []>} : vector<32x128xbf16>, vector<128x256xbf16>, vector<32x256xf32> -> vector<32x256xf32>
    %c0_9 = arith.constant 0 : index
    %c0_10 = arith.constant 0 : index
    %c0_11 = arith.constant 0 : index
    %28 = vector.load %arg6[%c0_9, %c0_10, %c0_11] : memref<1x32x256xf32, #tpu.memory_space<vmem>>, vector<1x32x256xf32>
    %29 = vector.shape_cast %28 : vector<1x32x256xf32> to vector<32x256xf32>
    %30 = arith.addf %29, %27 : vector<32x256xf32>
    %c0_12 = arith.constant 0 : index
    %c0_13 = arith.constant 0 : index
    %c0_14 = arith.constant 0 : index
    %31 = vector.load %arg6[%c0_12, %c0_13, %c0_14] : memref<1x32x256xf32, #tpu.memory_space<vmem>>, vector<1x32x256xf32>
    %32 = vector.shape_cast %31 : vector<1x32x256xf32> to vector<32x256xf32>
    %33 = vector.shape_cast %30 : vector<32x256xf32> to vector<1x32x256xf32>
    tpu.vector_store %arg6[%c0_12, %c0_13, %c0_14], %33 {strides = array<i32>} : memref<1x32x256xf32, #tpu.memory_space<vmem>>, vector<1x32x256xf32>,
    return
  }
  func.func @transform_0(%arg0: i32, %arg1: i32) -> i32 {
    %c0_i32 = arith.constant 0 : i32
    %c0_i32_0 = arith.constant 0 : i32
    return %c0_i32 : i32
  }
  func.func @transform_1(%arg0: i32, %arg1: i32) -> (i32, i32, i32) {
    %c0_i32 = arith.constant 0 : i32
    %c0_i32_0 = arith.constant 0 : i32
    %c0_i32_1 = arith.constant 0 : i32
    return %arg0, %c0_i32, %c0_i32_0 : i32, i32, i32
  }
  func.func @transform_2(%arg0: i32, %arg1: i32) -> (i32, i32) {
    %c0_i32 = arith.constant 0 : i32
    %c0_i32_0 = arith.constant 0 : i32
    %c0_i32_1 = arith.constant 0 : i32
    return %c0_i32, %c0_i32_0 : i32, i32
  }
  func.func @transform_3(%arg0: i32, %arg1: i32) -> (i32, i32) {
    %c0_i32 = arith.constant 0 : i32
    %c0_i32_0 = arith.constant 0 : i32
    %c0_i32_1 = arith.constant 0 : i32
    return %c0_i32, %c0_i32_0 : i32, i32
  }
  func.func @transform_4(%arg0: i32, %arg1: i32) -> (i32, i32, i32) {
    %c0_i32 = arith.constant 0 : i32
    %c0_i32_0 = arith.constant 0 : i32
    %c0_i32_1 = arith.constant 0 : i32
    return %arg0, %c0_i32, %c0_i32_0 : i32, i32, i32
  }
}

</mosaic_0001>

<llo_original>
// kernel: tpu_custom_call.1
$region0: #{tpu_custom_call.1}
  #allocation0 [shape = 'u32[]', space=smem, size = 0x4, offset = 0x4, fixed_abs, tag = 'smem constant byte address 0x4 - core index']
  #allocation1 [shape = 'u32[144,128]{1,0:T(1,128)}', space=vmem, size = 0x12000, scoped, tag = 'internal scratch']
  #allocation2 [shape = 'bf16[32,256]{1,0:T(16,128)(2,1)}', space=vmem, size = 0x4000, scoped, tag = 'scratch operand']
  #allocation3 [shape = 'bf16[32,256]{1,0:T(16,128)(2,1)}', space=vmem, size = 0x4000, scoped, tag = 'scratch operand']
  #allocation4 [shape = 'f32[1]{0:T(128)S(6)}', space=smem, size = 0x200, scoped, tag = 'scoped memory for tpu_custom_call.1']
  %s0 = inlined_call_operand.<no memory space> [shape: f32[1], index: 0, kind: input, shape index: {}]
  %s1 = inlined_call_operand.hbm [shape: f32[2,32,256], index: 1, kind: input, shape index: {}]
  %s2 = inlined_call_operand.hbm [shape: bf16[32,32], index: 2, kind: input, shape index: {}]
  %s3 = inlined_call_operand.hbm [shape: bf16[32,32], index: 3, kind: input, shape index: {}]
  %s4 = inlined_call_operand.hbm [shape: f32[2,32,256], index: 4, kind: output, shape index: {}]
  %s5 = sld [smem:[#allocation0]]
  $region65: #{tpu_custom_call.1} parent=0
    _
  %s7 = ssub.s32 1, %s5
  %s8 = scalar_select 0, %s7, %s5
  %9 = sst [smem:[#allocation4]] %s0
  $region1: #{tpu_custom_call.1} parent=0
    #allocation5 [shape = 'u8[65536]{0}', space=vmem, size = 0x10000, scoped, tag = 'input window, operand 1']
    #allocation6 [shape = 's32[2]{0}', space=sflag, size = 0x8, scoped, tag = 'scoped memory for tpu_custom_call.1']
    #allocation7 [shape = 's32[2]{0}', space=sflag, size = 0x8, scoped, tag = 'scoped memory for tpu_custom_call.1']
    #allocation8 [shape = 'u8[8192]{0}', space=vmem, size = 0x2000, scoped, tag = 'input window, operand 2, single buffered']
    #allocation9 [shape = 's32[1]{0}', space=sflag, size = 0x4, scoped, tag = 'scoped memory for tpu_custom_call.1']
    #allocation10 [shape = 'u8[8192]{0}', space=vmem, size = 0x2000, scoped, tag = 'input window, operand 3, single buffered']
    #allocation11 [shape = 'u8[65536]{0}', space=vmem, size = 0x10000, scoped, tag = 'output window, operand 0']
    %10 = vsyncpa [#allocation6], 0
    %s11 = scalar_lea.sflag [#allocation6], 1
    %12 = vsyncpa %s11, 0
    %13 = vsyncpa [#allocation9], 0
    %14 = vsyncpa [#allocation7], 0
    %s15 = scalar_lea.sflag [#allocation7], 1
    %16 = vsyncpa %s15, 0
    loop: start=0, step=1, limit=6
    $region2: #{tpu_custom_call.1} parent=1 // loop_pre_header
      _
    $region3: #{tpu_custom_call.1} parent=1 // loop_header
      %s18 = sphi 0, %s22
      %p19 = scmp.ge.s32.totalorder %s18, 6
      %s25 = sphi 0, %s37
      %s26 = sphi 0, %s33
      %s27 = sphi 0, %s25
      %s28 = sphi 0, %s26
      %s29 = sphi 0, %s27
      %s30 = sphi 0, %s28
      %s38 = sphi 0, %s38
      %s40 = sphi 0, %s38
      %s41 = sphi 0, %s40
      %s55 = sphi 0, %s41
      %s61 = sphi 0, %s63
      %s64 = sphi 0, %s61
      %s65 = sphi 0, %s64
      %s81 = sphi 0, %s65
      %s85 = sphi 0, %s85
      %s87 = sphi 0, %s85
      %s88 = sphi 0, %s87
      %s102 = sphi 0, %s88
      %s106 = sphi 0, %s106
      %s108 = sphi 0, %s106
      %s109 = sphi 0, %s108
      %s123 = sphi 0, %s109
      %s129 = sphi 0, %s131
      %s132 = sphi 0, %s129
      %s133 = sphi 0, %s132
      %s149 = sphi 0, %s133
    $region4: #{tpu_custom_call.1} parent=1 // loop_header_branch
      %21 = sbr.rel (%p19) target = $region8
    $region5: #{tpu_custom_call.1} parent=1 // loop_body
      %s23 = ssub.s32 %s18, 1
      %s24 = ssub.s32 %s18, 2
      %s31 = sadd.s32 1, %s26
      %p32 = scmp.ge.s32.totalorder %s31, 2
      %s33 = scalar_select %p32, 0, %s31
      %s34 = sadd.s32 1, %s25
      %s35 = scalar_select %p32, %s34, %s25
      %p36 = scmp.ge.s32.totalorder %s35, 2
      %s37 = scalar_select %p36, 0, %s35
      %s39 = sadd.s32 %s38, 1
      %p42 = scmp.eq.s32.totalorder %s18, 3
      %p43 = scmp.ne.s32.totalorder %s38, %s40
      %p44 = scmp.eq.s32.totalorder %s18, 0
      %p45 = por %p43, %p44
      %p46 = scmp.ne.s32.totalorder %s38, %s40
      %p47 = scmp.eq.s32.totalorder %s23, 3
      %p48 = por %p46, %p47
      %p49 = scmp.ne.s32.totalorder %s40, %s41
      %p50 = scmp.eq.s32.totalorder %s23, 0
      %p51 = por %p49, %p50
      %p52 = scmp.ne.s32.totalorder %s40, %s41
      %p53 = scmp.eq.s32.totalorder %s24, 3
      %p54 = por %p52, %p53
      %p56 = scmp.ne.s32.totalorder %s41, %s55
      %p57 = scmp.eq.s32.totalorder %s24, 0
      %p58 = por %p56, %p57
      %s59 = ssub.s32 %s25, %s37
      %p60 = scmp.eq.s32.totalorder %s59, 0
      %s62 = sadd.s32 %s61, 1
      %s63 = scalar_select %p60, %s61, %s62
      %p66 = pneg %p60
      %p67 = scmp.eq.s32.totalorder %s18, 3
      %p68 = por %p66, %p67
      %p69 = scmp.ne.s32.totalorder %s61, %s64
      %p70 = scmp.eq.s32.totalorder %s18, 0
      %p71 = por %p69, %p70
      %p72 = scmp.ne.s32.totalorder %s61, %s64
      %p73 = scmp.eq.s32.totalorder %s23, 3
      %p74 = por %p72, %p73
      %p75 = scmp.ne.s32.totalorder %s64, %s65
      %p76 = scmp.eq.s32.totalorder %s23, 0
      %p77 = por %p75, %p76
      %p78 = scmp.ne.s32.totalorder %s64, %s65
      %p79 = scmp.eq.s32.totalorder %s24, 3
      %p80 = por %p78, %p79
      %p82 = scmp.ne.s32.totalorder %s65, %s81
      %p83 = scmp.eq.s32.totalorder %s24, 0
      %p84 = por %p82, %p83
      %s86 = sadd.s32 %s85, 1
      %p89 = scmp.eq.s32.totalorder %s18, 3
      %p90 = scmp.ne.s32.totalorder %s85, %s87
      %p91 = scmp.eq.s32.totalorder %s18, 0
      %p92 = por %p90, %p91
      %p93 = scmp.ne.s32.totalorder %s85, %s87
      %p94 = scmp.eq.s32.totalorder %s23, 3
      %p95 = por %p93, %p94
      %p96 = scmp.ne.s32.totalorder %s87, %s88
      %p97 = scmp.eq.s32.totalorder %s23, 0
      %p98 = por %p96, %p97
      %p99 = scmp.ne.s32.totalorder %s87, %s88
      %p100 = scmp.eq.s32.totalorder %s24, 3
      %p101 = por %p99, %p100
      %p103 = scmp.ne.s32.totalorder %s88, %s102
      %p104 = scmp.eq.s32.totalorder %s24, 0
      %p105 = por %p103, %p104
      %s107 = sadd.s32 %s106, 1
      %p110 = scmp.eq.s32.totalorder %s18, 3
      %p111 = scmp.ne.s32.totalorder %s106, %s108
      %p112 = scmp.eq.s32.totalorder %s18, 0
      %p113 = por %p111, %p112
      %p114 = scmp.ne.s32.totalorder %s106, %s108
      %p115 = scmp.eq.s32.totalorder %s23, 3
      %p116 = por %p114, %p115
      %p117 = scmp.ne.s32.totalorder %s108, %s109
      %p118 = scmp.eq.s32.totalorder %s23, 0
      %p119 = por %p117, %p118
      %p120 = scmp.ne.s32.totalorder %s108, %s109
      %p121 = scmp.eq.s32.totalorder %s24, 3
      %p122 = por %p120, %p121
      %p124 = scmp.ne.s32.totalorder %s109, %s123
      %p125 = scmp.eq.s32.totalorder %s24, 0
      %p126 = por %p124, %p125
      %s127 = ssub.s32 %s25, %s37
      %p128 = scmp.eq.s32.totalorder %s127, 0
      %s130 = sadd.s32 %s129, 1
      %s131 = scalar_select %p128, %s129, %s130
      %p134 = pneg %p128
      %p135 = scmp.eq.s32.totalorder %s18, 3
      %p136 = por %p134, %p135
      %p137 = scmp.ne.s32.totalorder %s129, %s132
      %p138 = scmp.eq.s32.totalorder %s18, 0
      %p139 = por %p137, %p138
      %p140 = scmp.ne.s32.totalorder %s129, %s132
      %p141 = scmp.eq.s32.totalorder %s23, 3
      %p142 = por %p140, %p141
      %p143 = scmp.ne.s32.totalorder %s132, %s133
      %p144 = scmp.eq.s32.totalorder %s23, 0
      %p145 = por %p143, %p144
      %p146 = scmp.ne.s32.totalorder %s132, %s133
      %p147 = scmp.eq.s32.totalorder %s24, 3
      %p148 = por %p146, %p147
      %p150 = scmp.ne.s32.totalorder %s133, %s149
      %p151 = scmp.eq.s32.totalorder %s24, 0
      %p152 = por %p150, %p151
      %p153 = scmp.le.s32.totalorder 1, %s18
      %p154 = scmp.lt.s32.totalorder %s18, 5
      %p155 = pnand %p153, %p154
      %p156 = pneg %p155
      // Predicated region
      $region9: #{tpu_custom_call.1} parent=5 // pred_check
        _
      $region10: #{tpu_custom_call.1} parent=5 // pred_check_branch
        %158 = sbr.rel (%p155) target = $region12
      $region11: #{tpu_custom_call.1} parent=5 // pred_region
        %s159 = ssub.s32 %s18, 1
        // Predicated region
        $region13: #{tpu_custom_call.1} parent=11 // pred_check
          %p160 = pneg %p51
        $region14: #{tpu_custom_call.1} parent=11 // pred_check_branch
          %162 = sbr.rel (%p160) target = $region16
        $region15: #{tpu_custom_call.1} parent=11 // pred_region
          _
        $region16: #{tpu_custom_call.1} parent=11 // pred_fallthru
          _
        // Predicated region
        $region17: #{tpu_custom_call.1} parent=11 // pred_check
          %p163 = pneg %p98
        $region18: #{tpu_custom_call.1} parent=11 // pred_check_branch
          %165 = sbr.rel (%p163) target = $region20
        $region19: #{tpu_custom_call.1} parent=11 // pred_region
          %s167 = ssub.s32 256, 256
          %168 = vsyncadd [#allocation9], %s167
          %s169 = sshll.u32 [#allocation8], 4
          %s170 = int_to_ptr.vmem [resolvable:$true] %s169
          %175 = dma.hbm_to_vmem [thread:$0]  %s2, 256, %s170, [#allocation9], 64, 64, 4
        $region20: #{tpu_custom_call.1} parent=11 // pred_fallthru
          _
        // Predicated region
        $region21: #{tpu_custom_call.1} parent=11 // pred_check
          %p176 = pneg %p119
        $region22: #{tpu_custom_call.1} parent=11 // pred_check_branch
          %178 = sbr.rel (%p176) target = $region24
        $region23: #{tpu_custom_call.1} parent=11 // pred_region
          %s180 = ssub.s32 256, 256
          %181 = vsyncadd [#allocation9], %s180
          %s182 = sshll.u32 [#allocation10], 4
          %s183 = int_to_ptr.vmem [resolvable:$true] %s182
          %188 = dma.hbm_to_vmem [thread:$0]  %s3, 256, %s183, [#allocation9], 64, 64, 4
        $region24: #{tpu_custom_call.1} parent=11 // pred_fallthru
          _
      $region12: #{tpu_custom_call.1} parent=5 // pred_fallthru
        _
      %p189 = scmp.lt.s32.totalorder %s18, 4
      // Predicated region
      $region25: #{tpu_custom_call.1} parent=5 // pred_check
        %p190 = pneg %p189
      $region26: #{tpu_custom_call.1} parent=5 // pred_check_branch
        %192 = sbr.rel (%p190) target = $region28
      $region27: #{tpu_custom_call.1} parent=5 // pred_region
        // Predicated region
        $region29: #{tpu_custom_call.1} parent=27 // pred_check
          %p193 = pneg %p71
        $region30: #{tpu_custom_call.1} parent=27 // pred_check_branch
          %195 = sbr.rel (%p193) target = $region32
        $region31: #{tpu_custom_call.1} parent=27 // pred_region
          %s196 = sand.u32 %s61, 1
          %s197 = scalar_lea.sflag [#allocation6], %s196
          %s198 = sand.u32 %s61, 1
          %s199 = smul.addr %s198, 64
          %s200 = scalar_lea.vmem [#allocation5], %s199
          %s202 = ssub.s32 1024, 1024
          %203 = vsyncadd %s197, %s202
          %s204 = smul.addr %s25, 8
          %s205 = smul.addr %s204, 128
          %s206 = scalar_lea.hbm %s1, %s205
          %s207 = sshll.u32 %s200, 4
          %s208 = int_to_ptr.vmem [resolvable:$true] %s207
          %213 = dma.hbm_to_vmem [thread:$0]  %s206, 1024, %s208, %s197, 256, 256, 16
        $region32: #{tpu_custom_call.1} parent=27 // pred_fallthru
          _
      $region28: #{tpu_custom_call.1} parent=5 // pred_fallthru
        _
      %p214 = scmp.le.s32.totalorder 1, %s18
      %p215 = scmp.lt.s32.totalorder %s18, 5
      %p216 = pnand %p214, %p215
      %p217 = pneg %p216
      // Predicated region
      $region33: #{tpu_custom_call.1} parent=5 // pred_check
        _
      $region34: #{tpu_custom_call.1} parent=5 // pred_check_branch
        %219 = sbr.rel (%p216) target = $region36
      $region35: #{tpu_custom_call.1} parent=5 // pred_region
        %s220 = ssub.s32 %s18, 1
        %s221 = sand.u32 %s64, 1
        %s222 = scalar_lea.sflag [#allocation6], %s221
        %s223 = sand.u32 %s64, 1
        %s224 = smul.addr %s223, 64
        %s225 = scalar_lea.vmem [#allocation5], %s224
        // Predicated region
        $region37: #{tpu_custom_call.1} parent=35 // pred_check
          %p226 = pneg %p77
        $region38: #{tpu_custom_call.1} parent=35 // pred_check_branch
          %228 = sbr.rel (%p226) target = $region40
        $region39: #{tpu_custom_call.1} parent=35 // pred_region
          %229 = dma.done %s222, 1024
        $region40: #{tpu_custom_call.1} parent=35 // pred_fallthru
          _
        // Predicated region
        $region41: #{tpu_custom_call.1} parent=35 // pred_check
          %p230 = pneg %p98
        $region42: #{tpu_custom_call.1} parent=35 // pred_check_branch
          %232 = sbr.rel (%p230) target = $region44
        $region43: #{tpu_custom_call.1} parent=35 // pred_region
          %233 = dma.done [#allocation9], 256
        $region44: #{tpu_custom_call.1} parent=35 // pred_fallthru
          _
        // Predicated region
        $region45: #{tpu_custom_call.1} parent=35 // pred_check
          %p234 = pneg %p119
        $region46: #{tpu_custom_call.1} parent=35 // pred_check_branch
          %236 = sbr.rel (%p234) target = $region48
        $region47: #{tpu_custom_call.1} parent=35 // pred_region
          %237 = dma.done [#allocation9], 256
        $region48: #{tpu_custom_call.1} parent=35 // pred_fallthru
          _
        %p238 = pneg %p51
        %p239 = pneg %p48
        %s240 = sand.u32 %s64, 1
        %s241 = scalar_lea.sflag [#allocation6], %s240
        %s242 = sand.u32 %s64, 1
        %s243 = smul.addr %s242, 64
        %s244 = scalar_lea.vmem [#allocation5], %s243
        %p245 = pneg %p77
        %p246 = pneg %p74
        %p247 = pneg %p98
        %p248 = pneg %p95
        %p249 = pneg %p119
        %p250 = pneg %p116
        %p251 = pneg %p145
        %p252 = pneg %p142
        %s253 = sand.u32 %s132, 1
        %s254 = scalar_lea.sflag [#allocation7], %s253
        %s255 = sand.u32 %s132, 1
        %s256 = smul.addr %s255, 64
        %s257 = scalar_lea.vmem [#allocation11], %s256
        %p259 = scmp.eq.s32.totalorder %s28, 0
        // Predicated region
        $region49: #{tpu_custom_call.1} parent=35 // pred_check
          %p260 = pneg %p259
        $region50: #{tpu_custom_call.1} parent=35 // pred_check_branch
          %262 = sbr.rel (%p260) target = $region52
        $region51: #{tpu_custom_call.1} parent=35 // pred_region
          %v263 = vld [vmem:[%s225] sm:$0xff]
          %v264 = vld [vmem:[%s225 + $0x8] sm:$0xff]
          %v265 = vld [vmem:[%s225 + $0x10] sm:$0xff]
          %v266 = vld [vmem:[%s225 + $0x18] sm:$0xff]
          %v267 = vld [vmem:[%s225 + $0x20] sm:$0xff]
          %v268 = vld [vmem:[%s225 + $0x28] sm:$0xff]
          %v269 = vld [vmem:[%s225 + $0x30] sm:$0xff]
          %v270 = vld [vmem:[%s225 + $0x38] sm:$0xff]
          %v271 = vpack.c.bf16 %v265, %v263
          %v272 = vpack.c.bf16 %v266, %v264
          %v273 = vpack.c.bf16 %v269, %v267
          %v274 = vpack.c.bf16 %v270, %v268
          %v275 = vld [vmem:[#allocation8] sm:$0xf]
          %v276 = vld [vmem:[#allocation8 + $0x4] sm:$0xf]
          %v277 = vld [vmem:[#allocation8 + $0x8] sm:$0xf]
          %v278 = vld [vmem:[#allocation8 + $0xc] sm:$0xf]
          %v283 = vunpack.c.l.b16 %v275
          %v284 = vunpack.c.l.b16 %v276
          %v285 = vunpack.c.l.b16 %v277
          %v286 = vunpack.c.l.b16 %v278
          %v287 = vpack.c.b16 %v284, %v283
          %v288 = vpack.c.b16 %v286, %v285
          %vm289 = vcmask 261120
          %v291 = vsel %vm289, %v287, 0
          %v294 = vsel %vm289, %v288, 0
          %296 = vmatprep.subr.bf16.mxu0 %v272
          %297 = vmatpush1.bf16.msra.mxu0 %v271
          %298 = vmatprep.subr.bf16.mxu0 %v274
          %299 = vmatpush1.bf16.msra.mxu0 %v273
          %300 = vmatprep.subr.bf16.mxu0 0
          %301 = vmatpush1.bf16.msra.mxu0 0
          %302 = vmatprep.subr.bf16.mxu0 0
          %303 = vmatpush1.bf16.msra.mxu0 0
          %304 = vmatprep.subr.bf16.mxu0 0
          %305 = vmatpush1.bf16.msra.mxu0 0
          %306 = vmatprep.subr.bf16.mxu0 0
          %307 = vmatpush1.bf16.msra.mxu0 0
          %308 = vmatprep.subr.bf16.mxu0 0
          %309 = vmatpush1.bf16.msra.mxu0 0
          %310 = vmatprep.subr.bf16.mxu0 0
          %311 = vmatpush1.bf16.msra.mxu0 0
          %312 = vmatprep.subr.bf16.mxu0 0
          %313 = vmatpush1.bf16.msra.mxu0 0
          %314 = vmatprep.subr.bf16.mxu0 0
          %315 = vmatpush1.bf16.msra.mxu0 0
          %316 = vmatprep.subr.bf16.mxu0 0
          %317 = vmatpush1.bf16.msra.mxu0 0
          %318 = vmatprep.subr.bf16.mxu0 0
          %319 = vmatpush1.bf16.msra.mxu0 0
          %320 = vmatprep.subr.bf16.mxu0 0
          %321 = vmatpush1.bf16.msra.mxu0 0
          %322 = vmatprep.subr.bf16.mxu0 0
          %323 = vmatpush1.bf16.msra.mxu0 0
          %324 = vmatprep.subr.bf16.mxu0 0
          %325 = vmatpush1.bf16.msra.mxu0 0
          %326 = vmatprep.subr.bf16.mxu0 0
          %327 = vmatpush1.bf16.msra.mxu0 0
          %328 = vmatprep.mubr.bf16.mxu0 0
          %329 = vmatmul.mubr.bf16.gmra.mrb[0].mxu0 %v291
          %v330 = vpop.f32.mrb[0].mxu0
          %v331 = vadd.f32 0.0, %v330
          %v332 = vpop.f32.mrb[0].mxu0
          %v333 = vadd.f32 0.0, %v332
          %v334 = vpop.f32.mrb[0].mxu0
          %v335 = vadd.f32 0.0, %v334
          %v336 = vpop.f32.mrb[0].mxu0
          %v337 = vadd.f32 0.0, %v336
          %338 = vmatprep.mubr.bf16.mxu0 0
          %339 = vmatmul.mubr.bf16.gmra.mrb[0].mxu0 %v294
          %v340 = vpop.f32.mrb[0].mxu0
          %v341 = vadd.f32 0.0, %v340
          %v342 = vpop.f32.mrb[0].mxu0
          %v343 = vadd.f32 0.0, %v342
          %v344 = vpop.f32.mrb[0].mxu0
          %v345 = vadd.f32 0.0, %v344
          %v346 = vpop.f32.mrb[0].mxu0
          %v347 = vadd.f32 0.0, %v346
          %348 = vdwg.mxu0
          %v349 = vpack.c.bf16 %v335, %v331
          %v350 = vpack.c.bf16 %v337, %v333
          %v351 = vpack.c.bf16 %v345, %v341
          %v352 = vpack.c.bf16 %v347, %v343
          %353 = vst [vmem:[#allocation2] sm:$0xff] %v349
          %354 = vst [vmem:[#allocation2 + $0x8] sm:$0xff] %v350
          %355 = vst [vmem:[#allocation2 + $0x10] sm:$0xff] %v351
          %356 = vst [vmem:[#allocation2 + $0x18] sm:$0xff] %v352
          %v357 = vld [vmem:[#allocation10] sm:$0xf]
          %v358 = vld [vmem:[#allocation10 + $0x4] sm:$0xf]
          %v359 = vld [vmem:[#allocation10 + $0x8] sm:$0xf]
          %v360 = vld [vmem:[#allocation10 + $0xc] sm:$0xf]
          %v365 = vunpack.c.l.b16 %v357
          %v366 = vunpack.c.l.b16 %v358
          %v367 = vunpack.c.l.b16 %v359
          %v368 = vunpack.c.l.b16 %v360
          %v369 = vpack.c.b16 %v366, %v365
          %v370 = vpack.c.b16 %v368, %v367
          %v372 = vsel %vm289, %v369, 0
          %v375 = vsel %vm289, %v370, 0
          %377 = vmatprep.subr.bf16.mxu0 %v272
          %378 = vmatpush1.bf16.msra.mxu0 %v271
          %379 = vmatprep.subr.bf16.mxu0 %v274
          %380 = vmatpush1.bf16.msra.mxu0 %v273
          %381 = vmatprep.subr.bf16.mxu0 0
          %382 = vmatpush1.bf16.msra.mxu0 0
          %383 = vmatprep.subr.bf16.mxu0 0
          %384 = vmatpush1.bf16.msra.mxu0 0
          %385 = vmatprep.subr.bf16.mxu0 0
          %386 = vmatpush1.bf16.msra.mxu0 0
          %387 = vmatprep.subr.bf16.mxu0 0
          %388 = vmatpush1.bf16.msra.mxu0 0
          %389 = vmatprep.subr.bf16.mxu0 0
          %390 = vmatpush1.bf16.msra.mxu0 0
          %391 = vmatprep.subr.bf16.mxu0 0
          %392 = vmatpush1.bf16.msra.mxu0 0
          %393 = vmatprep.subr.bf16.mxu0 0
          %394 = vmatpush1.bf16.msra.mxu0 0
          %395 = vmatprep.subr.bf16.mxu0 0
          %396 = vmatpush1.bf16.msra.mxu0 0
          %397 = vmatprep.subr.bf16.mxu0 0
          %398 = vmatpush1.bf16.msra.mxu0 0
          %399 = vmatprep.subr.bf16.mxu0 0
          %400 = vmatpush1.bf16.msra.mxu0 0
          %401 = vmatprep.subr.bf16.mxu0 0
          %402 = vmatpush1.bf16.msra.mxu0 0
          %403 = vmatprep.subr.bf16.mxu0 0
          %404 = vmatpush1.bf16.msra.mxu0 0
          %405 = vmatprep.subr.bf16.mxu0 0
          %406 = vmatpush1.bf16.msra.mxu0 0
          %407 = vmatprep.subr.bf16.mxu0 0
          %408 = vmatpush1.bf16.msra.mxu0 0
          %409 = vmatprep.mubr.bf16.mxu0 0
          %410 = vmatmul.mubr.bf16.gmra.mrb[0].mxu0 %v372
          %v411 = vpop.f32.mrb[0].mxu0
          %v412 = vadd.f32 0.0, %v411
          %v413 = vpop.f32.mrb[0].mxu0
          %v414 = vadd.f32 0.0, %v413
          %v415 = vpop.f32.mrb[0].mxu0
          %v416 = vadd.f32 0.0, %v415
          %v417 = vpop.f32.mrb[0].mxu0
          %v418 = vadd.f32 0.0, %v417
          %419 = vmatprep.mubr.bf16.mxu0 0
          %420 = vmatmul.mubr.bf16.gmra.mrb[0].mxu0 %v375
          %v421 = vpop.f32.mrb[0].mxu0
          %v422 = vadd.f32 0.0, %v421
          %v423 = vpop.f32.mrb[0].mxu0
          %v424 = vadd.f32 0.0, %v423
          %v425 = vpop.f32.mrb[0].mxu0
          %v426 = vadd.f32 0.0, %v425
          %v427 = vpop.f32.mrb[0].mxu0
          %v428 = vadd.f32 0.0, %v427
          %429 = vdwg.mxu0
          %v430 = vpack.c.bf16 %v416, %v412
          %v431 = vpack.c.bf16 %v418, %v414
          %v432 = vpack.c.bf16 %v426, %v422
          %v433 = vpack.c.bf16 %v428, %v424
          %434 = vst [vmem:[#allocation3] sm:$0xff] %v430
          %435 = vst [vmem:[#allocation3 + $0x8] sm:$0xff] %v431
          %436 = vst [vmem:[#allocation3 + $0x10] sm:$0xff] %v432
          %437 = vst [vmem:[#allocation3 + $0x18] sm:$0xff] %v433
          %v438 = vld [vmem:[%s225] sm:$0xff]
          %v439 = vld [vmem:[%s225 + $0x8] sm:$0xff]
          %v440 = vld [vmem:[%s225 + $0x10] sm:$0xff]
          %v441 = vld [vmem:[%s225 + $0x18] sm:$0xff]
          %v442 = vld [vmem:[%s225 + $0x20] sm:$0xff]
          %v443 = vld [vmem:[%s225 + $0x28] sm:$0xff]
          %v444 = vld [vmem:[%s225 + $0x30] sm:$0xff]
          %v445 = vld [vmem:[%s225 + $0x38] sm:$0xff]
          %446 = vst [vmem:[%s257] sm:$0xff] %v438
          %447 = vst [vmem:[%s257 + $0x8] sm:$0xff] %v439
          %448 = vst [vmem:[%s257 + $0x10] sm:$0xff] %v440
          %449 = vst [vmem:[%s257 + $0x18] sm:$0xff] %v441
          %450 = vst [vmem:[%s257 + $0x20] sm:$0xff] %v442
          %451 = vst [vmem:[%s257 + $0x28] sm:$0xff] %v443
          %452 = vst [vmem:[%s257 + $0x30] sm:$0xff] %v444
          %453 = vst [vmem:[%s257 + $0x38] sm:$0xff] %v445
        $region52: #{tpu_custom_call.1} parent=35 // pred_fallthru
          _
        %s454 = smul.u32 %s28, 128
        %s455 = sshra.s32 %s454, 7
        %s456 = sand.u32 %s454, 127
        %s457 = smul.addr %s455, 8
        %s458 = scalar_lea.vmem %s225, %s457 [#allocation5]
        %v459 = vld [vmem:[%s458] sm:$0xff]
        %v460 = vld [vmem:[%s458 + $0x10] sm:$0xff]
        %v461 = vld [vmem:[%s458 + $0x20] sm:$0xff]
        %v462 = vld [vmem:[%s458 + $0x30] sm:$0xff]
        %v463 = vpack.c.bf16 %v460, %v459
        %v464 = vpack.c.bf16 %v462, %v461
        %v465 = vld [vmem:[#allocation2] sm:$0xff]
        %v466 = vld [vmem:[#allocation2 + $0x8] sm:$0xff]
        %v467 = vld [vmem:[#allocation2 + $0x10] sm:$0xff]
        %v468 = vld [vmem:[#allocation2 + $0x18] sm:$0xff]
        %469 = vxpose.xlu0.c.b16.start [1/8] %v463, 128
        %470 = vxpose.xlu0.c.b16.cont [2/8] %v464, 128
        %471 = vxpose.xlu0.c.b16.cont [3/8] 0, 128
        %472 = vxpose.xlu0.c.b16.cont [4/8] 0, 128
        %473 = vxpose.xlu0.c.b16.cont [5/8] 0, 128
        %474 = vxpose.xlu0.c.b16.cont [6/8] 0, 128
        %475 = vxpose.xlu0.c.b16.cont [7/8] 0, 128
        %476 = vxpose.xlu0.c.b16.end [8/8] 0, 128
        %v477 = vpop.trf.xlu0
        %v478 = vpop.trf.xlu0
        %v479 = vpop.trf.xlu0
        %v480 = vpop.trf.xlu0
        %v481 = vpop.trf.xlu0
        %v482 = vpop.trf.xlu0
        %v483 = vpop.trf.xlu0
        %v484 = vpop.trf.xlu0
        %vm485 = vcmask 261120
        %v487 = vsel %vm485, %v477, 0
        %v490 = vsel %vm485, %v478, 0
        %v493 = vsel %vm485, %v479, 0
        %v496 = vsel %vm485, %v480, 0
        %v499 = vsel %vm485, %v481, 0
        %v502 = vsel %vm485, %v482, 0
        %v505 = vsel %vm485, %v483, 0
        %v508 = vsel %vm485, %v484, 0
        %510 = vmatprep.subr.bf16.mxu0 %v466
        %511 = vmatpush1.bf16.msra.mxu0 %v465
        %512 = vmatprep.subr.bf16.mxu0 %v468
        %513 = vmatpush1.bf16.msra.mxu0 %v467
        %514 = vmatprep.subr.bf16.mxu0 0
        %515 = vmatpush1.bf16.msra.mxu0 0
        %516 = vmatprep.subr.bf16.mxu0 0
        %517 = vmatpush1.bf16.msra.mxu0 0
        %518 = vmatprep.subr.bf16.mxu0 0
        %519 = vmatpush1.bf16.msra.mxu0 0
        %520 = vmatprep.subr.bf16.mxu0 0
        %521 = vmatpush1.bf16.msra.mxu0 0
        %522 = vmatprep.subr.bf16.mxu0 0
        %523 = vmatpush1.bf16.msra.mxu0 0
        %524 = vmatprep.subr.bf16.mxu0 0
        %525 = vmatpush1.bf16.msra.mxu0 0
        %526 = vmatprep.subr.bf16.mxu0 0
        %527 = vmatpush1.bf16.msra.mxu0 0
        %528 = vmatprep.subr.bf16.mxu0 0
        %529 = vmatpush1.bf16.msra.mxu0 0
        %530 = vmatprep.subr.bf16.mxu0 0
        %531 = vmatpush1.bf16.msra.mxu0 0
        %532 = vmatprep.subr.bf16.mxu0 0
        %533 = vmatpush1.bf16.msra.mxu0 0
        %534 = vmatprep.subr.bf16.mxu0 0
        %535 = vmatpush1.bf16.msra.mxu0 0
        %536 = vmatprep.subr.bf16.mxu0 0
        %537 = vmatpush1.bf16.msra.mxu0 0
        %538 = vmatprep.subr.bf16.mxu0 0
        %539 = vmatpush1.bf16.msra.mxu0 0
        %540 = vmatprep.subr.bf16.mxu0 0
        %541 = vmatpush1.bf16.msra.mxu0 0
        %542 = vmatprep.mubr.bf16.mxu0 0
        %543 = vmatmul.mubr.bf16.gmra.mrb[0].mxu0 %v487
        %v544 = vpop.f32.mrb[0].mxu0
        %v545 = vadd.f32 0.0, %v544
        %v546 = vpop.f32.mrb[0].mxu0
        %v547 = vadd.f32 0.0, %v546
        %v548 = vpop.f32.mrb[0].mxu0
        %v549 = vadd.f32 0.0, %v548
        %v550 = vpop.f32.mrb[0].mxu0
        %v551 = vadd.f32 0.0, %v550
        %552 = vmatprep.mubr.bf16.mxu0 0
        %553 = vmatmul.mubr.bf16.gmra.mrb[0].mxu0 %v490
        %v554 = vpop.f32.mrb[0].mxu0
        %v555 = vadd.f32 0.0, %v554
        %v556 = vpop.f32.mrb[0].mxu0
        %v557 = vadd.f32 0.0, %v556
        %v558 = vpop.f32.mrb[0].mxu0
        %v559 = vadd.f32 0.0, %v558
        %v560 = vpop.f32.mrb[0].mxu0
        %v561 = vadd.f32 0.0, %v560
        %562 = vmatprep.mubr.bf16.mxu0 0
        %563 = vmatmul.mubr.bf16.gmra.mrb[0].mxu0 %v493
        %v564 = vpop.f32.mrb[0].mxu0
        %v565 = vadd.f32 0.0, %v564
        %v566 = vpop.f32.mrb[0].mxu0
        %v567 = vadd.f32 0.0, %v566
        %v568 = vpop.f32.mrb[0].mxu0
        %v569 = vadd.f32 0.0, %v568
        %v570 = vpop.f32.mrb[0].mxu0
        %v571 = vadd.f32 0.0, %v570
        %572 = vmatprep.mubr.bf16.mxu0 0
        %573 = vmatmul.mubr.bf16.gmra.mrb[0].mxu0 %v496
        %v574 = vpop.f32.mrb[0].mxu0
        %v575 = vadd.f32 0.0, %v574
        %v576 = vpop.f32.mrb[0].mxu0
        %v577 = vadd.f32 0.0, %v576
        %v578 = vpop.f32.mrb[0].mxu0
        %v579 = vadd.f32 0.0, %v578
        %v580 = vpop.f32.mrb[0].mxu0
        %v581 = vadd.f32 0.0, %v580
        %582 = vmatprep.mubr.bf16.mxu0 0
        %583 = vmatmul.mubr.bf16.gmra.mrb[0].mxu0 %v499
        %v584 = vpop.f32.mrb[0].mxu0
        %v585 = vadd.f32 0.0, %v584
        %v586 = vpop.f32.mrb[0].mxu0
        %v587 = vadd.f32 0.0, %v586
        %v588 = vpop.f32.mrb[0].mxu0
        %v589 = vadd.f32 0.0, %v588
        %v590 = vpop.f32.mrb[0].mxu0
        %v591 = vadd.f32 0.0, %v590
        %592 = vmatprep.mubr.bf16.mxu0 0
        %593 = vmatmul.mubr.bf16.gmra.mrb[0].mxu0 %v502
        %v594 = vpop.f32.mrb[0].mxu0
        %v595 = vadd.f32 0.0, %v594
        %v596 = vpop.f32.mrb[0].mxu0
        %v597 = vadd.f32 0.0, %v596
        %v598 = vpop.f32.mrb[0].mxu0
        %v599 = vadd.f32 0.0, %v598
        %v600 = vpop.f32.mrb[0].mxu0
        %v601 = vadd.f32 0.0, %v600
        %602 = vmatprep.mubr.bf16.mxu0 0
        %603 = vmatmul.mubr.bf16.gmra.mrb[0].mxu0 %v505
        %v604 = vpop.f32.mrb[0].mxu0
        %v605 = vadd.f32 0.0, %v604
        %v606 = vpop.f32.mrb[0].mxu0
        %v607 = vadd.f32 0.0, %v606
        %v608 = vpop.f32.mrb[0].mxu0
        %v609 = vadd.f32 0.0, %v608
        %v610 = vpop.f32.mrb[0].mxu0
        %v611 = vadd.f32 0.0, %v610
        %612 = vmatprep.mubr.bf16.mxu0 0
        %613 = vmatmul.mubr.bf16.gmra.mrb[0].mxu0 %v508
        %v614 = vpop.f32.mrb[0].mxu0
        %v615 = vadd.f32 0.0, %v614
        %v616 = vpop.f32.mrb[0].mxu0
        %v617 = vadd.f32 0.0, %v616
        %v618 = vpop.f32.mrb[0].mxu0
        %v619 = vadd.f32 0.0, %v618
        %v620 = vpop.f32.mrb[0].mxu0
        %v621 = vadd.f32 0.0, %v620
        %622 = vdwg.mxu0
        %v623 = vmax.f32 %v545, %v547
        %624 = vmax.xlane.f32.xlu0 %v623
        %v625 = vpop.xlane.xlu0 %624
        %v626 = vmax.f32 %v549, %v551
        %627 = vmax.xlane.f32.xlu0 %v626
        %v628 = vpop.xlane.xlu0 %627
        %v629 = vmax.f32 %v555, %v557
        %630 = vmax.xlane.f32.xlu0 %v629
        %v631 = vpop.xlane.xlu0 %630
        %v632 = vmax.f32 %v559, %v561
        %633 = vmax.xlane.f32.xlu0 %v632
        %v634 = vpop.xlane.xlu0 %633
        %v635 = vmax.f32 %v565, %v567
        %636 = vmax.xlane.f32.xlu0 %v635
        %v637 = vpop.xlane.xlu0 %636
        %v638 = vmax.f32 %v569, %v571
        %639 = vmax.xlane.f32.xlu0 %v638
        %v640 = vpop.xlane.xlu0 %639
        %v641 = vmax.f32 %v575, %v577
        %642 = vmax.xlane.f32.xlu0 %v641
        %v643 = vpop.xlane.xlu0 %642
        %v644 = vmax.f32 %v579, %v581
        %645 = vmax.xlane.f32.xlu0 %v644
        %v646 = vpop.xlane.xlu0 %645
        %v647 = vmax.f32 %v585, %v587
        %648 = vmax.xlane.f32.xlu0 %v647
        %v649 = vpop.xlane.xlu0 %648
        %v650 = vmax.f32 %v589, %v591
        %651 = vmax.xlane.f32.xlu0 %v650
        %v652 = vpop.xlane.xlu0 %651
        %v653 = vmax.f32 %v595, %v597
        %654 = vmax.xlane.f32.xlu0 %v653
        %v655 = vpop.xlane.xlu0 %654
        %v656 = vmax.f32 %v599, %v601
        %657 = vmax.xlane.f32.xlu0 %v656
        %v658 = vpop.xlane.xlu0 %657
        %v659 = vmax.f32 %v605, %v607
        %660 = vmax.xlane.f32.xlu0 %v659
        %v661 = vpop.xlane.xlu0 %660
        %v662 = vmax.f32 %v609, %v611
        %663 = vmax.xlane.f32.xlu0 %v662
        %v664 = vpop.xlane.xlu0 %663
        %v665 = vmax.f32 %v615, %v617
        %666 = vmax.xlane.f32.xlu0 %v665
        %v667 = vpop.xlane.xlu0 %666
        %v668 = vmax.f32 %v619, %v621
        %669 = vmax.xlane.f32.xlu0 %v668
        %v670 = vpop.xlane.xlu0 %669
        %v671 = vsub.f32 %v545, %v625
        %v672 = vsub.f32 %v547, %v625
        %v673 = vsub.f32 %v549, %v628
        %v674 = vsub.f32 %v551, %v628
        %v675 = vsub.f32 %v555, %v631
        %v676 = vsub.f32 %v557, %v631
        %v677 = vsub.f32 %v559, %v634
        %v678 = vsub.f32 %v561, %v634
        %v679 = vsub.f32 %v565, %v637
        %v680 = vsub.f32 %v567, %v637
        %v681 = vsub.f32 %v569, %v640
        %v682 = vsub.f32 %v571, %v640
        %v683 = vsub.f32 %v575, %v643
        %v684 = vsub.f32 %v577, %v643
        %v685 = vsub.f32 %v579, %v646
        %v686 = vsub.f32 %v581, %v646
        %v687 = vsub.f32 %v585, %v649
        %v688 = vsub.f32 %v587, %v649
        %v689 = vsub.f32 %v589, %v652
        %v690 = vsub.f32 %v591, %v652
        %v691 = vsub.f32 %v595, %v655
        %v692 = vsub.f32 %v597, %v655
        %v693 = vsub.f32 %v599, %v658
        %v694 = vsub.f32 %v601, %v658
        %v695 = vsub.f32 %v605, %v661
        %v696 = vsub.f32 %v607, %v661
        %v697 = vsub.f32 %v609, %v664
        %v698 = vsub.f32 %v611, %v664
        %v699 = vsub.f32 %v615, %v667
        %v700 = vsub.f32 %v617, %v667
        %v701 = vsub.f32 %v619, %v670
        %v702 = vsub.f32 %v621, %v670
        %v703 = vmul.f32 %v671, 1.442695
        %v704 = vpow.pop %v703
        %v705 = vmul.f32 %v672, 1.442695
        %v706 = vpow.pop %v705
        %v707 = vmul.f32 %v673, 1.442695
        %v708 = vpow.pop %v707
        %v709 = vmul.f32 %v674, 1.442695
        %v710 = vpow.pop %v709
        %v711 = vmul.f32 %v675, 1.442695
        %v712 = vpow.pop %v711
        %v713 = vmul.f32 %v676, 1.442695
        %v714 = vpow.pop %v713
        %v715 = vmul.f32 %v677, 1.442695
        %v716 = vpow.pop %v715
        %v717 = vmul.f32 %v678, 1.442695
        %v718 = vpow.pop %v717
        %v719 = vmul.f32 %v679, 1.442695
        %v720 = vpow.pop %v719
        %v721 = vmul.f32 %v680, 1.442695
        %v722 = vpow.pop %v721
        %v723 = vmul.f32 %v681, 1.442695
        %v724 = vpow.pop %v723
        %v725 = vmul.f32 %v682, 1.442695
        %v726 = vpow.pop %v725
        %v727 = vmul.f32 %v683, 1.442695
        %v728 = vpow.pop %v727
        %v729 = vmul.f32 %v684, 1.442695
        %v730 = vpow.pop %v729
        %v731 = vmul.f32 %v685, 1.442695
        %v732 = vpow.pop %v731
        %v733 = vmul.f32 %v686, 1.442695
        %v734 = vpow.pop %v733
        %v735 = vmul.f32 %v687, 1.442695
        %v736 = vpow.pop %v735
        %v737 = vmul.f32 %v688, 1.442695
        %v738 = vpow.pop %v737
        %v739 = vmul.f32 %v689, 1.442695
        %v740 = vpow.pop %v739
        %v741 = vmul.f32 %v690, 1.442695
        %v742 = vpow.pop %v741
        %v743 = vmul.f32 %v691, 1.442695
        %v744 = vpow.pop %v743
        %v745 = vmul.f32 %v692, 1.442695
        %v746 = vpow.pop %v745
        %v747 = vmul.f32 %v693, 1.442695
        %v748 = vpow.pop %v747
        %v749 = vmul.f32 %v694, 1.442695
        %v750 = vpow.pop %v749
        %v751 = vmul.f32 %v695, 1.442695
        %v752 = vpow.pop %v751
        %v753 = vmul.f32 %v696, 1.442695
        %v754 = vpow.pop %v753
        %v755 = vmul.f32 %v697, 1.442695
        %v756 = vpow.pop %v755
        %v757 = vmul.f32 %v698, 1.442695
        %v758 = vpow.pop %v757
        %v759 = vmul.f32 %v699, 1.442695
        %v760 = vpow.pop %v759
        %v761 = vmul.f32 %v700, 1.442695
        %v762 = vpow.pop %v761
        %v763 = vmul.f32 %v701, 1.442695
        %v764 = vpow.pop %v763
        %v765 = vmul.f32 %v702, 1.442695
        %v766 = vpow.pop %v765
        %v767 = vadd.f32 %v704, %v706
        %768 = vadd.xlane.f32.xlu0 %v767
        %v769 = vpop.xlane.xlu0 %768
        %v770 = vadd.f32 %v708, %v710
        %771 = vadd.xlane.f32.xlu0 %v770
        %v772 = vpop.xlane.xlu0 %771
        %v773 = vadd.f32 %v712, %v714
        %774 = vadd.xlane.f32.xlu0 %v773
        %v775 = vpop.xlane.xlu0 %774
        %v776 = vadd.f32 %v716, %v718
        %777 = vadd.xlane.f32.xlu0 %v776
        %v778 = vpop.xlane.xlu0 %777
        %v779 = vadd.f32 %v720, %v722
        %780 = vadd.xlane.f32.xlu0 %v779
        %v781 = vpop.xlane.xlu0 %780
        %v782 = vadd.f32 %v724, %v726
        %783 = vadd.xlane.f32.xlu0 %v782
        %v784 = vpop.xlane.xlu0 %783
        %v785 = vadd.f32 %v728, %v730
        %786 = vadd.xlane.f32.xlu0 %v785
        %v787 = vpop.xlane.xlu0 %786
        %v788 = vadd.f32 %v732, %v734
        %789 = vadd.xlane.f32.xlu0 %v788
        %v790 = vpop.xlane.xlu0 %789
        %v791 = vadd.f32 %v736, %v738
        %792 = vadd.xlane.f32.xlu0 %v791
        %v793 = vpop.xlane.xlu0 %792
        %v794 = vadd.f32 %v740, %v742
        %795 = vadd.xlane.f32.xlu0 %v794
        %v796 = vpop.xlane.xlu0 %795
        %v797 = vadd.f32 %v744, %v746
        %798 = vadd.xlane.f32.xlu0 %v797
        %v799 = vpop.xlane.xlu0 %798
        %v800 = vadd.f32 %v748, %v750
        %801 = vadd.xlane.f32.xlu0 %v800
        %v802 = vpop.xlane.xlu0 %801
        %v803 = vadd.f32 %v752, %v754
        %804 = vadd.xlane.f32.xlu0 %v803
        %v805 = vpop.xlane.xlu0 %804
        %v806 = vadd.f32 %v756, %v758
        %807 = vadd.xlane.f32.xlu0 %v806
        %v808 = vpop.xlane.xlu0 %807
        %v809 = vadd.f32 %v760, %v762
        %810 = vadd.xlane.f32.xlu0 %v809
        %v811 = vpop.xlane.xlu0 %810
        %v812 = vadd.f32 %v764, %v766
        %813 = vadd.xlane.f32.xlu0 %v812
        %v814 = vpop.xlane.xlu0 %813
        %s815 = sld [smem:[#allocation4]]
        %v816 = vrcp.pop %v769
        %v817 = vrcp.pop %v772
        %v818 = vrcp.pop %v775
        %v819 = vrcp.pop %v778
        %v820 = vrcp.pop %v781
        %v821 = vrcp.pop %v784
        %v822 = vrcp.pop %v787
        %v823 = vrcp.pop %v790
        %v824 = vrcp.pop %v793
        %v825 = vrcp.pop %v796
        %v826 = vrcp.pop %v799
        %v827 = vrcp.pop %v802
        %v828 = vrcp.pop %v805
        %v829 = vrcp.pop %v808
        %v830 = vrcp.pop %v811
        %v831 = vrcp.pop %v814
        %v832 = vstv %s815
        %v833 = vmul.f32 %v832, %v816
        %v834 = vmul.f32 %v832, %v817
        %v835 = vmul.f32 %v832, %v818
        %v836 = vmul.f32 %v832, %v819
        %v837 = vmul.f32 %v832, %v820
        %v838 = vmul.f32 %v832, %v821
        %v839 = vmul.f32 %v832, %v822
        %v840 = vmul.f32 %v832, %v823
        %v841 = vmul.f32 %v832, %v824
        %v842 = vmul.f32 %v832, %v825
        %v843 = vmul.f32 %v832, %v826
        %v844 = vmul.f32 %v832, %v827
        %v845 = vmul.f32 %v832, %v828
        %v846 = vmul.f32 %v832, %v829
        %v847 = vmul.f32 %v832, %v830
        %v848 = vmul.f32 %v832, %v831
        %v849 = vmul.f32 %v704, %v833
        %v850 = vmul.f32 %v706, %v833
        %v851 = vmul.f32 %v708, %v834
        %v852 = vmul.f32 %v710, %v834
        %v853 = vmul.f32 %v712, %v835
        %v854 = vmul.f32 %v714, %v835
        %v855 = vmul.f32 %v716, %v836
        %v856 = vmul.f32 %v718, %v836
        %v857 = vmul.f32 %v720, %v837
        %v858 = vmul.f32 %v722, %v837
        %v859 = vmul.f32 %v724, %v838
        %v860 = vmul.f32 %v726, %v838
        %v861 = vmul.f32 %v728, %v839
        %v862 = vmul.f32 %v730, %v839
        %v863 = vmul.f32 %v732, %v840
        %v864 = vmul.f32 %v734, %v840
        %v865 = vmul.f32 %v736, %v841
        %v866 = vmul.f32 %v738, %v841
        %v867 = vmul.f32 %v740, %v842
        %v868 = vmul.f32 %v742, %v842
        %v869 = vmul.f32 %v744, %v843
        %v870 = vmul.f32 %v746, %v843
        %v871 = vmul.f32 %v748, %v844
        %v872 = vmul.f32 %v750, %v844
        %v873 = vmul.f32 %v752, %v845
        %v874 = vmul.f32 %v754, %v845
        %v875 = vmul.f32 %v756, %v846
        %v876 = vmul.f32 %v758, %v846
        %v877 = vmul.f32 %v760, %v847
        %v878 = vmul.f32 %v762, %v847
        %v879 = vmul.f32 %v764, %v848
        %v880 = vmul.f32 %v766, %v848
        %s881 = smul.addr %s455, 8
        %s882 = scalar_lea.vmem [#allocation3], %s881
        %v883 = vld [vmem:[%s882] sm:$0xff]
        %v884 = vld [vmem:[%s882 + $0x10] sm:$0xff]
        %v885 = vpack.c.bf16 %v851, %v849
        %v886 = vpack.c.bf16 %v852, %v850
        %v887 = vpack.c.bf16 %v855, %v853
        %v888 = vpack.c.bf16 %v856, %v854
        %v889 = vpack.c.bf16 %v859, %v857
        %v890 = vpack.c.bf16 %v860, %v858
        %v891 = vpack.c.bf16 %v863, %v861
        %v892 = vpack.c.bf16 %v864, %v862
        %v893 = vpack.c.bf16 %v867, %v865
        %v894 = vpack.c.bf16 %v868, %v866
        %v895 = vpack.c.bf16 %v871, %v869
        %v896 = vpack.c.bf16 %v872, %v870
        %v897 = vpack.c.bf16 %v875, %v873
        %v898 = vpack.c.bf16 %v876, %v874
        %v899 = vpack.c.bf16 %v879, %v877
        %v900 = vpack.c.bf16 %v880, %v878
        %901 = vmatprep.subr.bf16.mxu0 %v886
        %902 = vmatpush1.bf16.msra.mxu0 %v885
        %903 = vmatprep.subr.bf16.mxu0 %v888
        %904 = vmatpush1.bf16.msra.mxu0 %v887
        %905 = vmatprep.subr.bf16.mxu0 %v890
        %906 = vmatpush1.bf16.msra.mxu0 %v889
        %907 = vmatprep.subr.bf16.mxu0 %v892
        %908 = vmatpush1.bf16.msra.mxu0 %v891
        %909 = vmatprep.subr.bf16.mxu0 %v894
        %910 = vmatpush1.bf16.msra.mxu0 %v893
        %911 = vmatprep.subr.bf16.mxu0 %v896
        %912 = vmatpush1.bf16.msra.mxu0 %v895
        %913 = vmatprep.subr.bf16.mxu0 %v898
        %914 = vmatpush1.bf16.msra.mxu0 %v897
        %915 = vmatprep.subr.bf16.mxu0 %v900
        %916 = vmatpush1.bf16.msra.mxu0 %v899
        %917 = vmatprep.subr.bf16.mxu0 0
        %918 = vmatpush1.bf16.msra.mxu0 0
        %919 = vmatprep.subr.bf16.mxu0 0
        %920 = vmatpush1.bf16.msra.mxu0 0
        %921 = vmatprep.subr.bf16.mxu0 0
        %922 = vmatpush1.bf16.msra.mxu0 0
        %923 = vmatprep.subr.bf16.mxu0 0
        %924 = vmatpush1.bf16.msra.mxu0 0
        %925 = vmatprep.subr.bf16.mxu0 0
        %926 = vmatpush1.bf16.msra.mxu0 0
        %927 = vmatprep.subr.bf16.mxu0 0
        %928 = vmatpush1.bf16.msra.mxu0 0
        %929 = vmatprep.subr.bf16.mxu0 0
        %930 = vmatpush1.bf16.msra.mxu0 0
        %931 = vmatprep.subr.bf16.mxu0 0
        %932 = vmatpush1.bf16.msra.mxu0 0
        %933 = vmatprep.mubr.bf16.mxu0 0
        %934 = vmatmul.mubr.bf16.gmra.mrb[0].mxu0 %v883
        %v935 = vpop.f32.mrb[0].mxu0
        %v936 = vadd.f32 0.0, %v935
        %v937 = vpop.f32.mrb[0].mxu0
        %v938 = vadd.f32 0.0, %v937
        %v939 = vpop.f32.mrb[0].mxu0
        %v940 = vadd.f32 0.0, %v939
        %v941 = vpop.f32.mrb[0].mxu0
        %v942 = vadd.f32 0.0, %v941
        %943 = vmatprep.mubr.bf16.mxu0 0
        %944 = vmatmul.mubr.bf16.gmra.mrb[0].mxu0 %v884
        %v945 = vpop.f32.mrb[0].mxu0
        %v946 = vadd.f32 0.0, %v945
        %v947 = vpop.f32.mrb[0].mxu0
        %v948 = vadd.f32 0.0, %v947
        %v949 = vpop.f32.mrb[0].mxu0
        %v950 = vadd.f32 0.0, %v949
        %v951 = vpop.f32.mrb[0].mxu0
        %v952 = vadd.f32 0.0, %v951
        %953 = vdwg.mxu0
        %v954 = vld [vmem:[%s257] sm:$0xff]
        %v955 = vld [vmem:[%s257 + $0x8] sm:$0xff]
        %v956 = vld [vmem:[%s257 + $0x10] sm:$0xff]
        %v957 = vld [vmem:[%s257 + $0x18] sm:$0xff]
        %v958 = vld [vmem:[%s257 + $0x20] sm:$0xff]
        %v959 = vld [vmem:[%s257 + $0x28] sm:$0xff]
        %v960 = vld [vmem:[%s257 + $0x30] sm:$0xff]
        %v961 = vld [vmem:[%s257 + $0x38] sm:$0xff]
        %v962 = vadd.f32 %v954, %v936
        %v963 = vadd.f32 %v955, %v938
        %v964 = vadd.f32 %v956, %v940
        %v965 = vadd.f32 %v957, %v942
        %v966 = vadd.f32 %v958, %v946
        %v967 = vadd.f32 %v959, %v948
        %v968 = vadd.f32 %v960, %v950
        %v969 = vadd.f32 %v961, %v952
        %970 = vst [vmem:[%s257] sm:$0xff] %v962
        %971 = vst [vmem:[%s257 + $0x8] sm:$0xff] %v963
        %972 = vst [vmem:[%s257 + $0x10] sm:$0xff] %v964
        %973 = vst [vmem:[%s257 + $0x18] sm:$0xff] %v965
        %974 = vst [vmem:[%s257 + $0x20] sm:$0xff] %v966
        %975 = vst [vmem:[%s257 + $0x28] sm:$0xff] %v967
        %976 = vst [vmem:[%s257 + $0x30] sm:$0xff] %v968
        %977 = vst [vmem:[%s257 + $0x38] sm:$0xff] %v969
        %s978 = sand.u32 %s132, 1
        %s979 = scalar_lea.sflag [#allocation7], %s978
        %s980 = sand.u32 %s132, 1
        %s981 = smul.addr %s980, 64
        %s982 = scalar_lea.vmem [#allocation11], %s981
        // Predicated region
        $region53: #{tpu_custom_call.1} parent=35 // pred_check
          %p983 = pneg %p142
        $region54: #{tpu_custom_call.1} parent=35 // pred_check_branch
          %985 = sbr.rel (%p983) target = $region56
        $region55: #{tpu_custom_call.1} parent=35 // pred_region
          %s987 = ssub.s32 1024, 1024
          %988 = vsyncadd %s979, %s987
          %s989 = smul.addr %s27, 8
          %s990 = smul.addr %s989, 128
          %s991 = scalar_lea.hbm %s4, %s990
          %s992 = sshll.u32 %s982, 4
          %s993 = int_to_ptr.vmem [resolvable:$true] %s992
          %998 = dma.vmem_to_hbm [thread:$0]  %s993, 1024, %s991, %s979, 256, 256, 16
        $region56: #{tpu_custom_call.1} parent=35 // pred_fallthru
          _
      $region36: #{tpu_custom_call.1} parent=5 // pred_fallthru
        _
      %p999 = scmp.le.s32.totalorder 2, %s18
      // Predicated region
      $region57: #{tpu_custom_call.1} parent=5 // pred_check
        %p1000 = pneg %p999
      $region58: #{tpu_custom_call.1} parent=5 // pred_check_branch
        %1002 = sbr.rel (%p1000) target = $region60
      $region59: #{tpu_custom_call.1} parent=5 // pred_region
        %s1003 = ssub.s32 %s18, 2
        // Predicated region
        $region61: #{tpu_custom_call.1} parent=59 // pred_check
          %p1004 = pneg %p148
        $region62: #{tpu_custom_call.1} parent=59 // pred_check_branch
          %1006 = sbr.rel (%p1004) target = $region64
        $region63: #{tpu_custom_call.1} parent=59 // pred_region
          %s1007 = sand.u32 %s133, 1
          %s1008 = scalar_lea.sflag [#allocation7], %s1007
          %s1009 = sand.u32 %s133, 1
          %s1010 = smul.addr %s1009, 64
          %s1011 = scalar_lea.vmem [#allocation11], %s1010
          %1012 = dma.done %s1008, 1024
        $region64: #{tpu_custom_call.1} parent=59 // pred_fallthru
          _
      $region60: #{tpu_custom_call.1} parent=5 // pred_fallthru
        _
    $region6: #{tpu_custom_call.1} parent=1 // loop_footer
      %s22 = sadd.s32 1, %s18
    $region7: #{tpu_custom_call.1} parent=1 // loop_footer_branch
      %17 = sbr.rel target = $region3
    $region8: #{tpu_custom_call.1} parent=1 // loop_exit
      _
    %1013 = vsyncpa [#allocation6], 1
    %s1014 = scalar_lea.sflag [#allocation6], 1
    %1015 = vsyncpa %s1014, 1
    %1016 = vsyncpa [#allocation9], 1
    %1017 = vsyncpa [#allocation7], 1
    %s1018 = scalar_lea.sflag [#allocation7], 1
    %1019 = vsyncpa %s1018, 1

</llo_original>
